<compile_context>
chip_gen: v6e
topology: v6e:2x2x1
jax: 0.10.0
libtpu: 0.0.40
codegen_flags: <defaults>
</compile_context>

<pallas_src>
import math

import jax
import jax.numpy as jnp
from jax.experimental import pallas as pl
from jax.experimental.pallas import tpu as pltpu


def _rel_pos_embed_kernel(x_ref, w_ref, b_ref, o_ref):
    # x_ref: (TM, 4g)   grouped, flattened relative positions
    # w_ref: (4g, Eg)   block-diagonal weight (in x out layout)
    # b_ref: (1,  Eg)   tiled bias (f32)
    # o_ref: (TM, Eg)   output embeddings
    y = jnp.dot(x_ref[...], w_ref[...], preferred_element_type=jnp.float32)
    o_ref[...] = (y + b_ref[...]).astype(o_ref.dtype)


def _round_up(x, n):
    return ((x + n - 1) // n) * n


def _choose_tm(mg_rows, eg):
    """Largest grouped-row tile that fits comfortably in VMEM everywhere."""
    # x tile is lane-padded to >=128 lanes in VMEM; out tile is eg (>=128 when
    # grouping applies) lanes.  Budget assumes f32 (worst case) and 2x for
    # double buffering, with headroom under v5e's 16 MiB default scope.
    per_row_bytes = (128 + max(eg, 128)) * 4
    budget = 8 * 1024 * 1024
    tm = (budget // (2 * per_row_bytes)) // 8 * 8
    tm = max(8, min(tm, 4096))
    return min(tm, mg_rows)  # mg_rows is always a multiple of 8


def relative_position_embedding(relative_positions, weight, bias):
    """nn.Linear(4, embedding_size) semantics.

    Args:
      relative_positions: [..., 4] (f32 or bf16)
      weight:             [embedding_size, 4]  (PyTorch layout: out x in)
      bias:               [embedding_size]
    Returns:
      [..., embedding_size] in the dtype of relative_positions.
    """
    *lead, in_feat = relative_positions.shape
    assert in_feat == 4, "RelativePositionEmbedding expects last dim == 4"
    e = weight.shape[0]
    out_dtype = relative_positions.dtype

    m = math.prod(lead) if lead else 1

    # Lane-dense grouping factor: pack g rows into one 128-lane output row.
    if e < 128 and 128 % e == 0:
        g = 128 // e
    else:
        g = 1
    kg = in_feat * g  # grouped inner dim
    eg = e * g        # grouped output dim (multiple of 128 when grouping)

    # Pad row count only to a multiple of 8*g so the grouped row count (mg)
    # is sublane-aligned; tile-boundary remainders are handled by the grid.
    m_pad = _round_up(m, 8 * g)
    mg = m_pad // g

    # --- Input layout plumbing (no compute hoisted) -------------------------
    x2d = relative_positions.reshape(m, in_feat)
    if m_pad != m:
        x2d = jnp.pad(x2d, ((0, m_pad - m), (0, 0)))
    xg = x2d.reshape(mg, kg).astype(out_dtype)

    w_t = jnp.transpose(weight)  # (4, E)
    if g > 1:
        # Block-diagonal weight: g copies of W^T along the diagonal.
        wg = jnp.kron(jnp.eye(g, dtype=w_t.dtype), w_t)  # (4g, Eg)
        bg = jnp.tile(bias, g)                            # (Eg,)
    else:
        wg, bg = w_t, bias
    wg = wg.astype(out_dtype)
    bg = bg.reshape(1, eg).astype(jnp.float32)

    tm = _choose_tm(mg, eg)
    grid = pl.cdiv(mg, tm)

    itemsize = jnp.dtype(out_dtype).itemsize
    cost = pl.CostEstimate(
        flops=2 * m * in_feat * e + m * e,
        transcendentals=0,
        bytes_accessed=(m * in_feat + in_feat * e + e + m * e) * itemsize,
    )

    out_g = pl.pallas_call(
        _rel_pos_embed_kernel,
        out_shape=jax.ShapeDtypeStruct((mg, eg), out_dtype),
        grid_spec=pltpu.PrefetchScalarGridSpec(
            num_scalar_prefetch=0,
            grid=(grid,),
            in_specs=[
                pl.BlockSpec((tm, kg), lambda i: (i, 0)),   # streamed x tiles
                pl.BlockSpec((kg, eg), lambda i: (0, 0)),   # grid-invariant W
                pl.BlockSpec((1, eg), lambda i: (0, 0)),    # grid-invariant b
            ],
            out_specs=pl.BlockSpec((tm, eg), lambda i: (i, 0)),
        ),
        compiler_params=pltpu.CompilerParams(
            dimension_semantics=("parallel",),
            vmem_limit_bytes=32 * 1024 * 1024,
        ),
        cost_estimate=cost,
    )(xg, wg, bg)

    # [mg, Eg] is bit-identical to [m_pad, E] row-major: reshape is free.
    out2d = out_g.reshape(m_pad, e)
    if m_pad != m:
        out2d = out2d[:m]
    return out2d.reshape(*lead, e)


if __name__ == "__main__":
    key = jax.random.PRNGKey(0)
    k_x1, k_x2, k_x3, k_w1, k_b1, k_w2, k_b2 = jax.random.split(key, 7)

    def make_params(kw, kb, e):
        bound = 1.0 / jnp.sqrt(4.0)  # PyTorch default init range
        w = jax.random.uniform(kw, (e, 4), jnp.float32, -bound, bound)
        b = jax.random.uniform(kb, (e,), jnp.float32, -bound, bound)
        return w, b

    fn = jax.jit(relative_position_embedding)

    # Case 1: spec-like small shape, grouped lane-dense path (E=32 -> g=4).
    e1 = 32
    w1, b1 = make_params(k_w1, k_b1, e1)
    x1 = jax.random.normal(k_x1, (2, 8, 8, 4), jnp.float32)
    out1 = jax.block_until_ready(fn(x1, w1, b1))
    ref1 = x1 @ w1.T + b1
    assert out1.shape == (2, 8, 8, e1)
    assert out1.dtype == x1.dtype
    assert jnp.allclose(out1, ref1, atol=1e-5, rtol=1e-5)

    # Case 2: E=128 (no grouping) with a row count that needs padding.
    e2 = 128
    w2, b2 = make_params(k_w2, k_b2, e2)
    x2 = jax.random.normal(k_x2, (2, 7, 9, 4), jnp.float32)
    out2 = jax.block_until_ready(fn(x2, w2, b2))
    ref2 = x2 @ w2.T + b2
    assert out2.shape == (2, 7, 9, e2)
    assert jnp.allclose(out2, ref2, atol=1e-5, rtol=1e-5)

    # Case 3: larger M -> multi-step grid with a partial final block.
    x3 = jax.random.normal(k_x3, (16, 40, 40, 4), jnp.float32)
    out3 = jax.block_until_ready(fn(x3, w1, b1))
    ref3 = x3 @ w1.T + b1
    assert out3.shape == (16, 40, 40, e1)
    assert jnp.allclose(out3, ref3, atol=1e-4, rtol=1e-4)

    print("KERNEL_OK")
</pallas_src>

<mosaic_0001>
module attributes {stable_mosaic.version = 11 : i64} {
  func.func @_rel_pos_embed_kernel(%arg0: i32, %arg1: memref<32x16xf32, #tpu.memory_space<vmem>>, %arg2: memref<16x128xf32, #tpu.memory_space<vmem>>, %arg3: memref<1x128xf32, #tpu.memory_space<vmem>>, %arg4: memref<32x128xf32, #tpu.memory_space<vmem>>) attributes {dimension_semantics = [#tpu.dimension_semantics<parallel>], iteration_bounds = array<i64: 1>, scalar_prefetch = 0 : i64, scratch_operands = 0 : i64, tpu.core_type = #tpu.core_type<tc>, window_params = [{transform_indices = @transform_0, window_bounds = array<i64: 32, 16>}, {pipeline_mode = #tpu.pipeline_mode<synchronous>, transform_indices = @transform_1, window_bounds = array<i64: 16, 128>}, {pipeline_mode = #tpu.pipeline_mode<synchronous>, transform_indices = @transform_2, window_bounds = array<i64: 1, 128>}, {transform_indices = @transform_3, window_bounds = array<i64: 32, 128>}]} {
    %c0 = arith.constant 0 : index
    %c0_0 = arith.constant 0 : index
    %0 = vector.load %arg1[%c0, %c0_0] : memref<32x16xf32, #tpu.memory_space<vmem>>, vector<32x16xf32>
    %c0_1 = arith.constant 0 : index
    %c0_2 = arith.constant 0 : index
    %1 = vector.load %arg2[%c0_1, %c0_2] : memref<16x128xf32, #tpu.memory_space<vmem>>, vector<16x128xf32>
    %cst = arith.constant dense<0.000000e+00> : vector<32x128xf32>
    %2 = tpu.matmul %0, %1, %cst {dimension_numbers = #tpu.dot_dimension_numbers<[1], [0], [0], [1], [0, 0, 1, 1], [], []>} : vector<32x16xf32>, vector<16x128xf32>, vector<32x128xf32> -> vector<32x128xf32>
    %c0_3 = arith.constant 0 : index
    %c0_4 = arith.constant 0 : index
    %3 = vector.load %arg3[%c0_3, %c0_4] : memref<1x128xf32, #tpu.memory_space<vmem>>, vector<1x128xf32>
    %4 = vector.broadcast %3 : vector<1x128xf32> to vector<32x128xf32>
    %5 = arith.addf %2, %4 : vector<32x128xf32>
    %c0_5 = arith.constant 0 : index
    %c0_6 = arith.constant 0 : index
    %6 = vector.load %arg4[%c0_5, %c0_6] : memref<32x128xf32, #tpu.memory_space<vmem>>, vector<32x128xf32>
    tpu.vector_store %arg4[%c0_5, %c0_6], %5 {strides = array<i32>} : memref<32x128xf32, #tpu.memory_space<vmem>>, vector<32x128xf32>,
    return
  }
  func.func @transform_0(%arg0: i32) -> (i32, i32) {
    %c0_i32 = arith.constant 0 : i32
    %c0_i32_0 = arith.constant 0 : i32
    return %arg0, %c0_i32 : i32, i32
  }
  func.func @transform_1(%arg0: i32) -> (i32, i32) {
    %c0_i32 = arith.constant 0 : i32
    %c0_i32_0 = arith.constant 0 : i32
    %c0_i32_1 = arith.constant 0 : i32
    return %c0_i32, %c0_i32_0 : i32, i32
  }
  func.func @transform_2(%arg0: i32) -> (i32, i32) {
    %c0_i32 = arith.constant 0 : i32
    %c0_i32_0 = arith.constant 0 : i32
    %c0_i32_1 = arith.constant 0 : i32
    return %c0_i32, %c0_i32_0 : i32, i32
  }
  func.func @transform_3(%arg0: i32) -> (i32, i32) {
    %c0_i32 = arith.constant 0 : i32
    %c0_i32_0 = arith.constant 0 : i32
    return %arg0, %c0_i32 : i32, i32
  }
}

</mosaic_0001>

<llo_original>
// kernel: tile.8
$region0: #{tile.8}
  #allocation0 [shape = 's32[1]{0}', space=sflag, size = 0x4, scoped, tag = 'scoped memory for tile.8']
  %s0 = inlined_call_operand.vmem [shape: f32[32], index: 0, kind: input, shape index: {}]
  %s1 = inlined_call_operand.vmem [shape: f32[4,32], index: 1, kind: output, shape index: {}]
  // Predicated region
  $region2: #{tile.8} parent=0 // pred_check
    _
  $region3: #{tile.8} parent=0 // pred_check_branch
    %3 = sbr.rel (0) target = $region5
  $region4: #{tile.8} parent=0 // pred_region
    _
  $region5: #{tile.8} parent=0 // pred_fallthru
    _
  %v4 = vld [vmem:[%s0] ss:$0 sm:$0xff]
  %5 = vst [vmem:[%s1] sm:$0xf] %v4

// kernel: tile.9
$region0: #{tile.9}
  %s0 = inlined_call_operand.vmem [shape: f32[4,32], index: 0, kind: input, shape index: {}]
  %s1 = inlined_call_operand.vmem [shape: f32[1,128], index: 1, kind: output, shape index: {}]
  $region1: #{tile.9} parent=0
    #allocation0 [shape = 'u8[4096]{0}', space=vmem, size = 0x1000, scoped, tag = 'scoped mem for output reshape']
    #allocation1 [shape = 'u8[4096]{0}', space=vmem, size = 0x1000, scoped, tag = 'scoped mem for input reshape']
    %s3 = sshll.u32 1, 4
    %s4 = ssub.s32 %s3, 1
    %v5 = vld [vmem:[%s0] sm:%s4]
    %6 = vst [vmem:[#allocation1] sm:%s4] %v5
    %v7 = vld [vmem:[#allocation1] sm:$0x1]
    %vm8 = vcmask 261120
    %9 = vst.msk [vmem:[#allocation0] sm:$0x1] %vm8, %v7
    %s10 = scalar_lea.vmem [#allocation1], 3
    %v11 = vld [vmem:[%s10] sm:$0x1]
    %12 = vrot.lane.b32.xlu0 %v11, 96
    %v13 = vpop.permute.xlu0 %12
    %vm14 = vcmask 1048320
    %15 = vst.msk [vmem:[#allocation0] sm:$0x1] %vm14, %v13
    %s16 = scalar_lea.vmem [#allocation1], 2
    %v17 = vld [vmem:[%s16] sm:$0x1]
    %18 = vrot.lane.b32.xlu0 %v17, 64
    %v19 = vpop.permute.xlu0 %18
    %vm20 = vcmask 785920
    %21 = vst.msk [vmem:[#allocation0] sm:$0x1] %vm20, %v19
    %s22 = scalar_lea.vmem [#allocation1], 1
    %v23 = vld [vmem:[%s22] sm:$0x1]
    %24 = vrot.lane.b32.xlu0 %v23, 32
    %v25 = vpop.permute.xlu0 %24
    %vm26 = vcmask 523520
    %27 = vst.msk [vmem:[#allocation0] sm:$0x1] %vm26, %v25
    %s29 = sshll.u32 1, 1
    %s30 = ssub.s32 %s29, 1
    %v32 = vld [vmem:[#allocation0] sm:%s30]
    %s33 = sshll.u32 1, 1
    %s34 = ssub.s32 %s33, 1
    %35 = vst [vmem:[%s1] sm:%s34] %v32

// kernel: relative_position_embedding.1
$region0: #{relative_position_embedding.1}
  #allocation0 [shape = 'u32[]', space=smem, size = 0x4, offset = 0x4, fixed_abs, tag = 'smem constant byte address 0x4 - core index']
  #allocation1 [shape = 'u32[144,128]{1,0:T(1,128)}', space=vmem, size = 0x12000, scoped, tag = 'internal scratch']
  %s0 = inlined_call_operand.vmem [shape: f32[32,16], index: 0, kind: input, shape index: {}]
  %s1 = inlined_call_operand.vmem [shape: f32[16,128], index: 1, kind: input, shape index: {}]
  %s2 = inlined_call_operand.vmem [shape: f32[1,128], index: 2, kind: input, shape index: {}]
  %s3 = inlined_call_operand.vmem [shape: f32[32,128], index: 3, kind: output, shape index: {}]
  %s4 = sld [smem:[#allocation0]]
  $region22: #{relative_position_embedding.1} parent=0
    _
  %s6 = ssub.s32 1, %s4
  %s7 = scalar_select 0, %s6, %s4
  // Predicated region
  $region2: #{relative_position_embedding.1} parent=0 // pred_check
    _
  $region3: #{relative_position_embedding.1} parent=0 // pred_check_branch
    %9 = sbr.rel (0) target = $region5
  $region4: #{relative_position_embedding.1} parent=0 // pred_region
    _
  $region5: #{relative_position_embedding.1} parent=0 // pred_fallthru
    _
  // Predicated region
  $region6: #{relative_position_embedding.1} parent=0 // pred_check
    _
  $region7: #{relative_position_embedding.1} parent=0 // pred_check_branch
    %11 = sbr.rel (0) target = $region9
  $region8: #{relative_position_embedding.1} parent=0 // pred_region
    _
  $region9: #{relative_position_embedding.1} parent=0 // pred_fallthru
    _
  // Predicated region
  $region10: #{relative_position_embedding.1} parent=0 // pred_check
    _
  $region11: #{relative_position_embedding.1} parent=0 // pred_check_branch
    %13 = sbr.rel (0) target = $region13
  $region12: #{relative_position_embedding.1} parent=0 // pred_region
    _
  $region13: #{relative_position_embedding.1} parent=0 // pred_fallthru
    _
  %v14 = vld [vmem:[%s0] sm:$0xff]
  %v15 = vld [vmem:[%s0 + $0x8] sm:$0xff]
  %v16 = vld [vmem:[%s0 + $0x10] sm:$0xff]
  %v17 = vld [vmem:[%s0 + $0x18] sm:$0xff]
  %v18 = vld [vmem:[%s1] sm:$0xff]
  %v19 = vld [vmem:[%s1 + $0x8] sm:$0xff]
  %v20 = vld [vmem:[%s2] sm:$0x1]
  %v22 = vlaneseq
  %v23 = vshrl.u32 %v22, 7
  %v24 = vsub.s32 0, %v23
  %v25 = vrot.slane %v20, %v24
  %vm27 = vcmask 130048
  %v29 = vsel %vm27, %v14, 0
  %v32 = vsel %vm27, %v15, 0
  %v35 = vsel %vm27, %v16, 0
  %v38 = vsel %vm27, %v17, 0
  %40 = vmatprep.subr.mxu0 0.0
  %41 = vmatpush1.msra.mxu0 0.0
  %42 = vmatprep.subr.mxu0 0.0
  %43 = vmatpush1.msra.mxu0 0.0
  %44 = vmatprep.subr.mxu0 0.0
  %45 = vmatpush1.msra.mxu0 0.0
  %46 = vmatprep.subr.mxu0 0.0
  %47 = vmatpush1.msra.mxu0 0.0
  %48 = vmatprep.subr.mxu0 0.0
  %49 = vmatpush1.msra.mxu0 0.0
  %50 = vmatprep.subr.mxu0 0.0
  %51 = vmatpush1.msra.mxu0 0.0
  %52 = vmatprep.subr.mxu0 0.0
  %53 = vmatpush1.msra.mxu0 0.0
  %54 = vmatprep.subr.mxu0 0.0
  %55 = vmatpush1.msra.mxu0 0.0
  %56 = vmatprep.subr.mxu0 0.0
  %57 = vmatpush1.msra.mxu0 0.0
  %58 = vmatprep.subr.mxu0 0.0
  %59 = vmatpush1.msra.mxu0 0.0
  %60 = vmatprep.subr.mxu0 0.0
  %61 = vmatpush1.msra.mxu0 0.0
  %62 = vmatprep.subr.mxu0 0.0
  %63 = vmatpush1.msra.mxu0 0.0
  %64 = vmatprep.subr.mxu0 0.0
  %65 = vmatpush1.msra.mxu0 0.0
  %66 = vmatprep.subr.mxu0 0.0
  %67 = vmatpush1.msra.mxu0 0.0
  %68 = vmatprep.subr.mxu0 0.0
  %69 = vmatpush1.msra.mxu0 %v19
  %70 = vmatprep.subr.mxu0 0.0
  %71 = vmatpush1.msra.mxu0 %v18
  %72 = vmatprep.subr.mxu0 0.0
  %73 = vmatpush2.msra.mxu0 0.0
  %74 = vmatprep.subr.mxu0 0.0
  %75 = vmatpush2.msra.mxu0 0.0
  %76 = vmatprep.subr.mxu0 0.0
  %77 = vmatpush2.msra.mxu0 0.0
  %78 = vmatprep.subr.mxu0 0.0
  %79 = vmatpush2.msra.mxu0 0.0
  %80 = vmatprep.subr.mxu0 0.0
  %81 = vmatpush2.msra.mxu0 0.0
  %82 = vmatprep.subr.mxu0 0.0
  %83 = vmatpush2.msra.mxu0 0.0
  %84 = vmatprep.subr.mxu0 0.0
  %85 = vmatpush2.msra.mxu0 0.0
  %86 = vmatprep.subr.mxu0 0.0
  %87 = vmatpush2.msra.mxu0 0.0
  %88 = vmatprep.subr.mxu0 0.0
  %89 = vmatpush2.msra.mxu0 0.0
  %90 = vmatprep.subr.mxu0 0.0
  %91 = vmatpush2.msra.mxu0 0.0
  %92 = vmatprep.subr.mxu0 0.0
  %93 = vmatpush2.msra.mxu0 0.0
  %94 = vmatprep.subr.mxu0 0.0
  %95 = vmatpush2.msra.mxu0 0.0
  %96 = vmatprep.subr.mxu0 0.0
  %97 = vmatpush2.msra.mxu0 0.0
  %98 = vmatprep.subr.mxu0 0.0
  %99 = vmatpush2.msra.mxu0 0.0
  %100 = vmatprep.subr.mxu0 0.0
  %101 = vmatpush2.msra.mxu0 0.0
  %102 = vmatprep.subr.mxu0 0.0
  %103 = vmatpush2.msra.mxu0 0.0
  %104 = vmatprep.mubr.f32.mxu0 0.0
  %105 = vmatmul.mubr.f32.gmra.mxu0 %v29
  %v106 = vpop.f32.mrf.mxu0
  %v107 = vadd.f32 %v25, %v106
  %v108 = vpop.f32.mrf.mxu0
  %109 = vmatprep.mubr.f32.mxu0 0.0
  %110 = vmatmul.mubr.f32.gmra.mxu0 %v32
  %v111 = vpop.f32.mrf.mxu0
  %v112 = vadd.f32 %v25, %v111
  %v113 = vpop.f32.mrf.mxu0
  %114 = vmatprep.mubr.f32.mxu0 0.0
  %115 = vmatmul.mubr.f32.gmra.mxu0 %v35
  %v116 = vpop.f32.mrf.mxu0
  %v117 = vadd.f32 %v25, %v116
  %v118 = vpop.f32.mrf.mxu0
  %119 = vmatprep.mubr.f32.mxu0 0.0
  %120 = vmatmul.mubr.f32.gmra.mxu0 %v38
  %v121 = vpop.f32.mrf.mxu0
  %v122 = vadd.f32 %v25, %v121
  %v123 = vpop.f32.mrf.mxu0
  %124 = vdwg.mxu0
  %125 = vst [vmem:[%s3] sm:$0xff] %v107
  %126 = vst [vmem:[%s3 + $0x8] sm:$0xff] %v112
  %127 = vst [vmem:[%s3 + $0x10] sm:$0xff] %v117
  %128 = vst [vmem:[%s3 + $0x18] sm:$0xff] %v122
  // Predicated region
  $region14: #{relative_position_embedding.1} parent=0 // pred_check
    _
  $region15: #{relative_position_embedding.1} parent=0 // pred_check_branch
    %130 = sbr.rel (0) target = $region17
  $region16: #{relative_position_embedding.1} parent=0 // pred_region
    _
  $region17: #{relative_position_embedding.1} parent=0 // pred_fallthru
    _
  // Predicated region
  $region18: #{relative_position_embedding.1} parent=0 // pred_check
    _
  $region19: #{relative_position_embedding.1} parent=0 // pred_check_branch
    %132 = sbr.rel (0) target = $region21
  $region20: #{relative_position_embedding.1} parent=0 // pred_region
    _
  $region21: #{relative_position_embedding.1} parent=0 // pred_fallthru
    _

</llo_original>
